<compile_context>
chip_gen: v5e
topology: v5e:2x2
jax: 0.10.0
libtpu: 0.0.40
codegen_flags: <defaults>
</compile_context>

<pallas_src>
import functools

import jax
import jax.numpy as jnp
from jax.experimental import pallas as pl
from jax.experimental.pallas import tpu as pltpu


def _rmsnorm_kernel(x_ref, w_ref, o_ref, *, eps, dim, exact_typecast):
    # torch: output = self.norm(x.float()).type_as(x); return output * weight
    x = x_ref[...].astype(jnp.float32)                       # x.float()
    # Feature axis may be lane-padded with zeros; sum / true-dim == mean(x^2).
    ms = jnp.sum(x * x, axis=-1, keepdims=True) / dim        # mean(x^2, -1, keepdim)
    normed = x * jax.lax.rsqrt(ms + eps)                     # x * rsqrt(ms + eps)
    if exact_typecast:
        # Bit-exact `.type_as(x)` round-trip (only matters for sub-f32 inputs;
        # skip via exact_typecast=False on v5e where bf16 casts cost VALU ops).
        normed = normed.astype(x_ref.dtype).astype(jnp.float32)
    w = w_ref[...].astype(jnp.float32)                       # (1, dim_p) broadcasts
    o_ref[...] = (normed * w).astype(o_ref.dtype)


def _vmem_capacity_bytes():
    """Physical VMEM per TensorCore, with a generation-aware fallback."""
    try:
        return int(pltpu.get_tpu_info().vmem_capacity_bytes)
    except Exception:
        pass
    try:
        kind = jax.devices()[0].device_kind.lower()
    except Exception:
        kind = ""
    if "v7" in kind:
        return 64 << 20        # v7x: 64 MiB per TensorCore
    if "v5" in kind or "v6" in kind or "lite" in kind:
        return 128 << 20       # v5e / v6e: 128 MiB
    return 64 << 20            # unknown: be conservative


def _pick_row_tile(rows, dim_p, in_bytes, out_bytes, vmem_bytes):
    """Row tile giving >=~4 MiB of in+out bytes per step, within a VMEM budget
    that includes the in-kernel f32 working set, with an even step count."""
    granule = 8 if in_bytes >= 4 else 16        # sublane packing granularity

    # Resident bytes per row: double-buffered in + out blocks plus the f32
    # working set (upcast x and the normed intermediate) held in vregs/VMEM.
    per_row_resident = 2 * dim_p * (in_bytes + out_bytes) + 2 * dim_p * 4
    budget = int(vmem_bytes * 0.30)             # headroom for weight + scratch
    max_tile = max(budget // max(per_row_resident, 1), granule)

    # Byte-based floor/target: grow the block until in+out HBM traffic per
    # step reaches ~4 MiB so the ~0.35us fixed per-grid-step cost is amortized.
    per_row_io = dim_p * (in_bytes + out_bytes)
    target_tile = pl.cdiv(4 << 20, max(per_row_io, 1))

    tile = min(max(target_tile, granule), max_tile)
    tile = max((tile // granule) * granule, granule)

    # Don't tile beyond the actual row count (rounded up to the granule).
    rows_g = pl.cdiv(rows, granule) * granule
    tile = min(tile, rows_g)

    # Prefer an even number of grid steps so the "parallel" axis splits evenly
    # across v7x's two TensorCores (no effect on single-TC v5e/v6e).
    steps = pl.cdiv(rows, tile)
    if steps > 1 and steps % 2 == 1:
        even_steps = steps + 1
        tile = max(pl.cdiv(pl.cdiv(rows, even_steps), granule) * granule, granule)
    return tile


def rmsnorm(x, weight, eps, *, row_tile=None, exact_typecast=True,
            promote_output=True):
    """RMSNorm forward matching the PyTorch module semantics.

    x: (..., dim). weight: (dim,). Returns same shape as x. With
    promote_output=True (default) the output dtype is promote(x, weight),
    matching torch's `output * weight`; set False to keep x.dtype and halve
    output HBM traffic when weight is f32 and x is bf16.
    """
    orig_shape = x.shape
    dim = orig_shape[-1]
    rows = 1
    for s in orig_shape[:-1]:
        rows *= s

    out_dtype = jnp.promote_types(x.dtype, weight.dtype) if promote_output else x.dtype

    x2d = x.reshape(rows, dim)
    w2d = weight.reshape(1, dim)

    # Lane-dense layout: pad the feature axis to a multiple of 128 so output
    # stores are full (unmasked) lane stores. Zero padding is exact because
    # the kernel divides the sum of squares by the true `dim`.
    dim_p = max(pl.cdiv(dim, 128) * 128, 128)
    if dim_p != dim:
        x2d = jnp.pad(x2d, ((0, 0), (0, dim_p - dim)))
        w2d = jnp.pad(w2d, ((0, 0), (0, dim_p - dim)))

    in_bytes = jnp.dtype(x.dtype).itemsize
    out_bytes = jnp.dtype(out_dtype).itemsize
    vmem_bytes = _vmem_capacity_bytes()
    if row_tile is None:
        row_tile = _pick_row_tile(rows, dim_p, in_bytes, out_bytes, vmem_bytes)

    # Ragged final row block is handled by Pallas: padded rows hold garbage
    # but the reduction is per-row (lane axis), and the partial writeback is
    # masked, so no contamination of real rows.
    grid = (pl.cdiv(rows, row_tile),)

    # Scoped VMEM limit: double-buffered in/out blocks + f32 working set +
    # resident weight + compiler-scratch slack, capped below physical VMEM.
    used = (2 * row_tile * dim_p * (in_bytes + out_bytes)
            + 2 * row_tile * dim_p * 4
            + 2 * dim_p * 4
            + (2 << 20))
    vmem_limit = int(min(max(used, 16 << 20), int(vmem_bytes * 0.9)))

    out = pl.pallas_call(
        functools.partial(_rmsnorm_kernel, eps=eps, dim=dim,
                          exact_typecast=exact_typecast),
        out_shape=jax.ShapeDtypeStruct((rows, dim_p), out_dtype),
        grid_spec=pltpu.PrefetchScalarGridSpec(
            num_scalar_prefetch=0,
            grid=grid,
            in_specs=[
                pl.BlockSpec((row_tile, dim_p), lambda i: (i, 0)),
                # Weight block index is constant -> stays resident, no re-DMA.
                pl.BlockSpec((1, dim_p), lambda i: (0, 0)),
            ],
            out_specs=pl.BlockSpec((row_tile, dim_p), lambda i: (i, 0)),
        ),
        compiler_params=pltpu.CompilerParams(
            dimension_semantics=("parallel",),
            vmem_limit_bytes=vmem_limit,
        ),
    )(x2d, w2d)

    if dim_p != dim:
        out = out[:, :dim]
    return out.reshape(orig_shape)


def rmsnorm_ref(x, weight, eps):
    xf = x.astype(jnp.float32)
    ms = jnp.mean(xf * xf, axis=-1, keepdims=True)
    normed = (xf * jax.lax.rsqrt(ms + eps)).astype(x.dtype)
    return normed * weight


if __name__ == "__main__":
    key = jax.random.PRNGKey(0)
    batch, seq, dim = 2, 8, 32
    eps = 1e-5

    # NOTE: production dims should be multiples of 128; the demo's dim=32 also
    # exercises the lane-padding path.
    x = jax.random.normal(key, (batch, seq, dim), dtype=jnp.float32)
    # Deterministic parameter init: module initializes weight = ones(dim).
    weight = jnp.ones((dim,), dtype=jnp.float32)

    out = rmsnorm(x, weight, eps)
    out = jax.block_until_ready(out)

    ref = rmsnorm_ref(x, weight, eps)
    assert out.shape == x.shape and out.dtype == jnp.float32
    assert jnp.allclose(out, ref, atol=1e-5, rtol=1e-5)

    print("KERNEL_OK")
</pallas_src>

<mosaic_0001>
module attributes {stable_mosaic.version = 11 : i64} {
  func.func @_rmsnorm_kernel(%arg0: i32, %arg1: memref<16x128xf32, #tpu.memory_space<vmem>>, %arg2: memref<1x128xf32, #tpu.memory_space<vmem>>, %arg3: memref<16x128xf32, #tpu.memory_space<vmem>>) attributes {dimension_semantics = [#tpu.dimension_semantics<parallel>], iteration_bounds = array<i64: 1>, scalar_prefetch = 0 : i64, scratch_operands = 0 : i64, tpu.core_type = #tpu.core_type<tc>, window_params = [{transform_indices = @transform_0, window_bounds = array<i64: 16, 128>}, {pipeline_mode = #tpu.pipeline_mode<synchronous>, transform_indices = @transform_1, window_bounds = array<i64: 1, 128>}, {transform_indices = @transform_2, window_bounds = array<i64: 16, 128>}]} {
    %c0 = arith.constant 0 : index
    %c0_0 = arith.constant 0 : index
    %0 = vector.load %arg1[%c0, %c0_0] : memref<16x128xf32, #tpu.memory_space<vmem>>, vector<16x128xf32>
    %1 = arith.mulf %0, %0 : vector<16x128xf32>
    %cst = arith.constant dense<0.000000e+00> : vector<16xf32>
    %2 = vector.multi_reduction <add>, %1, %cst [1] : vector<16x128xf32> to vector<16xf32>
    %3 = vector.shape_cast %2 : vector<16xf32> to vector<16x1xf32>
    %cst_1 = arith.constant 3.200000e+01 : f32
    %4 = vector.broadcast %cst_1 : f32 to vector<16x1xf32>
    %5 = arith.divf %3, %4 : vector<16x1xf32>
    %cst_2 = arith.constant 9.99999974E-6 : f32
    %6 = vector.broadcast %cst_2 : f32 to vector<16x1xf32>
    %7 = arith.addf %5, %6 : vector<16x1xf32>
    %8 = math.rsqrt %7 : vector<16x1xf32>
    %9 = vector.broadcast %8 : vector<16x1xf32> to vector<16x128xf32>
    %10 = arith.mulf %0, %9 : vector<16x128xf32>
    %c0_3 = arith.constant 0 : index
    %c0_4 = arith.constant 0 : index
    %11 = vector.load %arg2[%c0_3, %c0_4] : memref<1x128xf32, #tpu.memory_space<vmem>>, vector<1x128xf32>
    %12 = vector.broadcast %11 : vector<1x128xf32> to vector<16x128xf32>
    %13 = arith.mulf %10, %12 : vector<16x128xf32>
    %c0_5 = arith.constant 0 : index
    %c0_6 = arith.constant 0 : index
    %14 = vector.load %arg3[%c0_5, %c0_6] : memref<16x128xf32, #tpu.memory_space<vmem>>, vector<16x128xf32>
    tpu.vector_store %arg3[%c0_5, %c0_6], %13 {strides = array<i32>} : memref<16x128xf32, #tpu.memory_space<vmem>>, vector<16x128xf32>,
    return
  }
  func.func @transform_0(%arg0: i32) -> (i32, i32) {
    %c0_i32 = arith.constant 0 : i32
    %c0_i32_0 = arith.constant 0 : i32
    return %arg0, %c0_i32 : i32, i32
  }
  func.func @transform_1(%arg0: i32) -> (i32, i32) {
    %c0_i32 = arith.constant 0 : i32
    %c0_i32_0 = arith.constant 0 : i32
    %c0_i32_1 = arith.constant 0 : i32
    return %c0_i32, %c0_i32_0 : i32, i32
  }
  func.func @transform_2(%arg0: i32) -> (i32, i32) {
    %c0_i32 = arith.constant 0 : i32
    %c0_i32_0 = arith.constant 0 : i32
    return %arg0, %c0_i32 : i32, i32
  }
}

</mosaic_0001>

<llo_original>
// kernel: tpu_custom_call.1
$region0: #{tpu_custom_call.1}
  #allocation0 [shape = 'u32[]', space=smem, size = 0x4, offset = 0x4, fixed_abs, tag = 'smem constant byte address 0x4 - core index']
  #allocation1 [shape = 'u32[72,128]{1,0:T(1,128)}', space=vmem, size = 0x9000, scoped, tag = 'internal scratch']
  %s0 = inlined_call_operand.hbm [shape: f32[16,128], index: 0, kind: input, shape index: {}]
  %s1 = inlined_call_operand.hbm [shape: f32[1,128], index: 1, kind: input, shape index: {}]
  %s2 = inlined_call_operand.hbm [shape: f32[16,128], index: 2, kind: output, shape index: {}]
  %s3 = sld [smem:[#allocation0]]
  $region26: #{tpu_custom_call.1} parent=0
    _
  %s5 = ssub.s32 1, %s3
  %s6 = scalar_select 0, %s5, %s3
  $region1: #{tpu_custom_call.1} parent=0
    #allocation2 [shape = 'u8[8192]{0}', space=vmem, size = 0x2000, scoped, tag = 'input window, operand 0, single buffered']
    #allocation3 [shape = 's32[1]{0}', space=sflag, size = 0x4, scoped, tag = 'scoped memory for tpu_custom_call.1']
    #allocation4 [shape = 's32[1]{0}', space=sflag, size = 0x4, scoped, tag = 'scoped memory for tpu_custom_call.1']
    #allocation5 [shape = 'u8[512]{0}', space=vmem, size = 0x400, scoped, tag = 'input window, operand 1, single buffered']
    #allocation6 [shape = 's32[1]{0}', space=sflag, size = 0x4, scoped, tag = 'scoped memory for tpu_custom_call.1']
    #allocation7 [shape = 'u8[8192]{0}', space=vmem, size = 0x2000, scoped, tag = 'output window, operand 0, single buffered']
    %7 = vsyncpa [#allocation3], 0
    %8 = vsyncpa [#allocation6], 0
    %9 = vsyncpa [#allocation4], 0
    // Predicated region
    $region2: #{tpu_custom_call.1} parent=1 // pred_check
      _
    $region3: #{tpu_custom_call.1} parent=1 // pred_check_branch
      %11 = sbr.rel (0) target = $region5
    $region4: #{tpu_custom_call.1} parent=1 // pred_region
      %13 = vsyncadd [#allocation3], 0
      %s14 = sshll.u32 %s0, 4
      %s15 = int_to_ptr.hbm [resolvable:$true] %s14
      %s16 = sshll.u32 [#allocation2], 4
      %s17 = int_to_ptr.vmem [resolvable:$true] %s16
      %22 = dma.hbm_to_vmem [thread:$0]  %s15, 256, %s17, [#allocation3], 128, 128, 8
    $region5: #{tpu_custom_call.1} parent=1 // pred_fallthru
      _
    // Predicated region
    $region6: #{tpu_custom_call.1} parent=1 // pred_check
      _
    $region7: #{tpu_custom_call.1} parent=1 // pred_check_branch
      %24 = sbr.rel (0) target = $region9
    $region8: #{tpu_custom_call.1} parent=1 // pred_region
      %26 = vsyncadd [#allocation6], 0
      %s28 = sshll.u32 %s1, 4
      %s29 = int_to_ptr.hbm [resolvable:$true] %s28
      %s30 = sshll.u32 [#allocation5], 4
      %s31 = int_to_ptr.vmem [resolvable:$true] %s30
      %33 = dma.hbm_to_vmem [thread:$0]  %s29, 16, %s31, [#allocation6]
    $region9: #{tpu_custom_call.1} parent=1 // pred_fallthru
      _
    // Predicated region
    $region10: #{tpu_custom_call.1} parent=1 // pred_check
      _
    $region11: #{tpu_custom_call.1} parent=1 // pred_check_branch
      %35 = sbr.rel (0) target = $region13
    $region12: #{tpu_custom_call.1} parent=1 // pred_region
      %37 = dma.done [#allocation3], 256
    $region13: #{tpu_custom_call.1} parent=1 // pred_fallthru
      _
    // Predicated region
    $region14: #{tpu_custom_call.1} parent=1 // pred_check
      _
    $region15: #{tpu_custom_call.1} parent=1 // pred_check_branch
      %39 = sbr.rel (0) target = $region17
    $region16: #{tpu_custom_call.1} parent=1 // pred_region
      %41 = dma.done [#allocation6], 16
    $region17: #{tpu_custom_call.1} parent=1 // pred_fallthru
      _
    %v42 = vld [vmem:[#allocation2] sm:$0xff]
    %v43 = vld [vmem:[#allocation2 + $0x8] sm:$0xff]
    %v44 = vmul.f32 %v42, %v42
    %v45 = vmul.f32 %v43, %v43
    %46 = vadd.xlane.f32.xlu0 %v44
    %v47 = vpop.xlane.xlu0 %46
    %48 = vadd.xlane.f32.xlu0 %v45
    %v49 = vpop.xlane.xlu0 %48
    %v50 = vrcp.pop 32.0
    %v51 = vmul.f32 32.0, %v50
    %v52 = vsub.f32 1.0, %v51
    %v53 = vmul.f32 %v50, %v52
    %v54 = vadd.f32 %v50, %v53
    %vm55 = vweird.f32 %v50
    %v56 = vsel %vm55, %v50, %v54
    %v57 = vmul.f32 %v47, %v56
    %v58 = vmul.f32 %v49, %v56
    %v59 = vadd.f32 %v57, 1e-05
    %v60 = vadd.f32 %v58, 1e-05
    %v61 = vrsqrt.pop %v59
    %v62 = vmul.f32 %v61, %v59
    %v63 = vmul.f32 %v62, %v61
    %v64 = vmul.f32 0.5, %v63
    %v65 = vsub.f32 1.5, %v64
    %v66 = vmul.f32 %v61, %v65
    %vm67 = vweird.f32 %v59
    %vm68 = vweird.f32 %v61
    %vm69 = vmor %vm67, %vm68
    %v70 = vsel %vm69, %v61, %v66
    %v71 = vrsqrt.pop %v60
    %v72 = vmul.f32 %v71, %v60
    %v73 = vmul.f32 %v72, %v71
    %v74 = vmul.f32 0.5, %v73
    %v75 = vsub.f32 1.5, %v74
    %v76 = vmul.f32 %v71, %v75
    %vm77 = vweird.f32 %v60
    %vm78 = vweird.f32 %v71
    %vm79 = vmor %vm77, %vm78
    %v80 = vsel %vm79, %v71, %v76
    %v81 = vmul.f32 %v42, %v70
    %v82 = vmul.f32 %v43, %v80
    %v83 = vld [vmem:[#allocation5] sm:$0x1]
    %v85 = vperm.slane %v83, 0
    %v87 = vmul.f32 %v81, %v85
    %v88 = vmul.f32 %v82, %v85
    %89 = vst [vmem:[#allocation7] sm:$0xff] %v87
    %90 = vst [vmem:[#allocation7 + $0x8] sm:$0xff] %v88
    // Predicated region
    $region18: #{tpu_custom_call.1} parent=1 // pred_check
      _
    $region19: #{tpu_custom_call.1} parent=1 // pred_check_branch
      %92 = sbr.rel (0) target = $region21
    $region20: #{tpu_custom_call.1} parent=1 // pred_region
      %94 = vsyncadd [#allocation4], 0
      %s95 = sshll.u32 [#allocation7], 4
      %s96 = int_to_ptr.vmem [resolvable:$true] %s95
      %s97 = sshll.u32 %s2, 4
      %s98 = int_to_ptr.hbm [resolvable:$true] %s97
      %103 = dma.vmem_to_hbm [thread:$0]  %s96, 256, %s98, [#allocation4], 128, 128, 8
    $region21: #{tpu_custom_call.1} parent=1 // pred_fallthru
      _
    // Predicated region
    $region22: #{tpu_custom_call.1} parent=1 // pred_check
      _
    $region23: #{tpu_custom_call.1} parent=1 // pred_check_branch
      %105 = sbr.rel (0) target = $region25
    $region24: #{tpu_custom_call.1} parent=1 // pred_region
      %107 = dma.done [#allocation4], 256
    $region25: #{tpu_custom_call.1} parent=1 // pred_fallthru
      _
    %108 = vsyncpa [#allocation3], 1
    %109 = vsyncpa [#allocation6], 1
    %110 = vsyncpa [#allocation4], 1

</llo_original>
